<compile_context>
chip_gen: v7x
topology: tpu7x:2x2x1
jax: 0.10.0
libtpu: 0.0.40
codegen_flags: <defaults>
</compile_context>

<pallas_src>
import functools

import jax
import jax.numpy as jnp
import numpy as np
from jax.experimental import pallas as pl
from jax.experimental.pallas import tpu as pltpu


def attention_kernel(hid_ref, enc_ref, w1t_ref, w2t_ref, b_ref, v_ref, out_ref,
                     *, approx_recip):
    # hid_ref : (BT, H)     hidden states for this batch tile (f32)
    # enc_ref : (BT*S, H)   pre-flattened encoder outputs (f32 or bf16)
    # w1t_ref : (H, H)      attn.weight[:, :H].T   (hidden-side projection)
    # w2t_ref : (H, H)      attn.weight[:, H:].T   (encoder-side projection)
    # b_ref   : (1, H)      attn.bias
    # v_ref   : (1, H)      v.weight (row vector)
    # out_ref : (BT, S)     softmax over src_len (lane-dense, S on lanes)
    BT, S = out_ref.shape
    H = hid_ref.shape[-1]

    # Hidden-side projection, hoisted: one (BT, H) @ (H, H) matmul shared
    # across all S positions (it is constant over src_len).
    hid_proj = (jnp.dot(hid_ref[...], w1t_ref[...],
                        preferred_element_type=jnp.float32)
                + b_ref[...])                                       # (BT, H)

    # Encoder-side projection: ONE MXU matmul with M = BT*S (clean 2D tile,
    # no reshape of the input block needed).
    enc_proj = jnp.dot(enc_ref[...], w2t_ref[...],
                       preferred_element_type=jnp.float32)          # (BT*S, H)

    # energy = tanh(cat([hid, enc]) @ W_attn^T + b)
    energy = jnp.tanh(enc_proj.reshape(BT, S, H) + hid_proj[:, None, :])

    # scores = energy @ v^T done as VPU multiply + XLU lane reduce instead of
    # an N=1 MXU matmul (keeps the MXU free, avoids a 1-lane column).
    v_row = v_ref[...].reshape(1, 1, H).astype(jnp.float32)
    scores = jnp.sum(energy * v_row, axis=-1)                       # (BT, S)

    # Softmax over src_len; S sits on the lane axis -> dense vregs / stores.
    m = jnp.max(scores, axis=-1, keepdims=True)
    e = jnp.exp(scores - m)
    denom = jnp.sum(e, axis=-1, keepdims=True)
    if approx_recip:
        out_ref[...] = e * pl.reciprocal(denom, approx=True)
    else:
        out_ref[...] = e / denom


def _pick_batch_tile(B, S, H, enc_itemsize, vmem_budget_bytes):
    """Largest batch tile that (a) divides B, (b) keeps the double-buffered
    enc/hid/out blocks inside the VMEM budget, and (c) leaves >= 2 grid steps
    once B >= 16 (DMA/compute overlap; shards across both v7x TensorCores)."""
    per_row = 2 * (S * H * enc_itemsize + (H + S) * 4)   # double-buffered blocks
    cap = max(1, vmem_budget_bytes // max(per_row, 1))
    divisors = [d for d in range(1, B + 1) if B % d == 0 and d <= cap]
    if not divisors:
        divisors = [1]
    multi = [d for d in divisors if B // d >= 2]
    pool = multi if (B >= 16 and multi) else divisors
    aligned = [d for d in pool if d % 8 == 0]             # sublane-aligned tiles
    return max(aligned) if aligned else max(pool)


def attention_forward(hidden, encoder_outputs, w_attn, b_attn, v_w, *,
                      batch_tile=None, use_bf16=False, approx_softmax=False,
                      vmem_budget_bytes=48 << 20):
    """hidden: (1, B, H), encoder_outputs: (B, S, H).
    w_attn: (H, 2H), b_attn: (H,), v_w: (1, H).  Returns (B, S) softmax."""
    B, S, H = encoder_outputs.shape
    hid = hidden[0].astype(jnp.float32)                  # (B, H)
    w1t = w_attn[:, :H].T.astype(jnp.float32)            # (H, H)
    b2d = b_attn.reshape(1, H).astype(jnp.float32)       # (1, H)
    v_row = v_w.reshape(1, H).astype(jnp.float32)        # (1, H)

    # bf16 halves HBM bytes of the dominant enc stream and uses the native
    # bf16 MXU path on v6e/v7x; OFF by default to keep 1e-5 f32 parity.
    enc_dtype = jnp.bfloat16 if use_bf16 else jnp.float32
    enc2d = encoder_outputs.reshape(B * S, H).astype(enc_dtype)  # free in XLA
    w2t = w_attn[:, H:].T.astype(enc_dtype)              # (H, H)

    enc_itemsize = jnp.dtype(enc_dtype).itemsize
    if batch_tile is None:
        batch_tile = _pick_batch_tile(B, S, H, enc_itemsize, vmem_budget_bytes)
    assert B % batch_tile == 0
    grid = (B // batch_tile,)

    # Constant-index weight blocks are never re-DMA'd but still get 2 buffers
    # by default; single-buffer them once they are big (large H) to reclaim
    # VMEM on v7x (64 MiB).  Never triggered at toy H, so the default path
    # stays the plain, well-tested BlockSpec.
    w_bytes = H * H * enc_itemsize
    w_kwargs = dict(pipeline_mode=pl.Buffered(1)) if w_bytes >= (4 << 20) else {}

    # Raise the scoped-VMEM limit only when the estimated footprint needs it
    # (16/32 MiB defaults on v5e / v6e+v7x).
    est_bytes = (2 * batch_tile * S * H * enc_itemsize        # enc blocks
                 + 2 * batch_tile * H * 4                     # hid blocks
                 + 2 * batch_tile * S * 4                     # out blocks
                 + (1 if w_kwargs else 2) * (H * H * 4 + H * H * enc_itemsize)
                 + 4 * H * 4)                                 # bias + v
    vmem_limit = None
    if est_bytes > (16 << 20):
        vmem_limit = int(min(est_bytes * 3 // 2, 100 << 20))

    kernel = functools.partial(attention_kernel, approx_recip=approx_softmax)

    out = pl.pallas_call(
        kernel,
        out_shape=jax.ShapeDtypeStruct((B, S), jnp.float32),
        grid=grid,
        in_specs=[
            pl.BlockSpec((batch_tile, H), lambda i: (i, 0)),         # hidden
            pl.BlockSpec((batch_tile * S, H), lambda i: (i, 0)),     # enc (pre-flattened)
            pl.BlockSpec((H, H), lambda i: (0, 0), **w_kwargs),      # W1^T (constant)
            pl.BlockSpec((H, H), lambda i: (0, 0), **w_kwargs),      # W2^T (constant)
            pl.BlockSpec((1, H), lambda i: (0, 0)),                  # bias (constant)
            pl.BlockSpec((1, H), lambda i: (0, 0)),                  # v row (constant)
        ],
        out_specs=pl.BlockSpec((batch_tile, S), lambda i: (i, 0)),   # lane-dense (B, S)
        compiler_params=pltpu.CompilerParams(
            dimension_semantics=("parallel",),
            vmem_limit_bytes=vmem_limit),
    )(hid, enc2d, w1t, w2t, b2d, v_row)
    return out


def attention_reference(hidden, encoder_outputs, w_attn, b_attn, v_w):
    """Plain-JAX mirror of the PyTorch forward pass, for verification."""
    B, S, H = encoder_outputs.shape
    hid = jnp.transpose(hidden, (1, 0, 2))                       # (B, 1, H)
    hid = jnp.broadcast_to(hid, (B, S, H))                       # repeat over src_len
    cat = jnp.concatenate([hid, encoder_outputs], axis=2)        # (B, S, 2H)
    energy = jnp.tanh(jnp.einsum("bsk,hk->bsh", cat, w_attn) + b_attn)
    attention = jnp.einsum("bsh,oh->bso", energy, v_w)[..., 0]   # (B, S)
    return jax.nn.softmax(attention, axis=1)


if __name__ == "__main__":
    B, S, H = 2, 8, 32

    key = jax.random.PRNGKey(0)
    k_hid, k_enc, k_w, k_b, k_v = jax.random.split(key, 5)

    # Inputs (what the GRU would hand to Attention).
    hidden = jax.random.normal(k_hid, (1, B, H), dtype=jnp.float32)
    encoder_outputs = jax.random.normal(k_enc, (B, S, H), dtype=jnp.float32)

    # Parameters, PyTorch-Linear style: weight (out, in), uniform(-1/sqrt(in), 1/sqrt(in)).
    bound_attn = 1.0 / np.sqrt(2 * H)
    w_attn = jax.random.uniform(k_w, (H, 2 * H), jnp.float32, -bound_attn, bound_attn)
    b_attn = jax.random.uniform(k_b, (H,), jnp.float32, -bound_attn, bound_attn)
    bound_v = 1.0 / np.sqrt(H)
    v_w = jax.random.uniform(k_v, (1, H), jnp.float32, -bound_v, bound_v)

    # Exact-precision path (f32 matmuls, exact divide) to match the reference.
    out = attention_forward(hidden, encoder_outputs, w_attn, b_attn, v_w,
                            use_bf16=False, approx_softmax=False)
    out = jax.block_until_ready(out)

    ref = attention_reference(hidden, encoder_outputs, w_attn, b_attn, v_w)
    assert out.shape == (B, S)
    assert bool(jnp.allclose(out, ref, atol=1e-5, rtol=1e-5))
    assert bool(jnp.allclose(jnp.sum(out, axis=1), jnp.ones((B,)), atol=1e-5))

    print("KERNEL_OK")
</pallas_src>

<mosaic_0001>
module attributes {stable_mosaic.version = 11 : i64} {
  func.func @attention_kernel(%arg0: i32, %arg1: memref<2x32xf32, #tpu.memory_space<vmem>>, %arg2: memref<16x32xf32, #tpu.memory_space<vmem>>, %arg3: memref<32x32xf32, #tpu.memory_space<vmem>>, %arg4: memref<32x32xf32, #tpu.memory_space<vmem>>, %arg5: memref<1x32xf32, #tpu.memory_space<vmem>>, %arg6: memref<1x32xf32, #tpu.memory_space<vmem>>, %arg7: memref<2x8xf32, #tpu.memory_space<vmem>>) attributes {dimension_semantics = [#tpu.dimension_semantics<parallel>], iteration_bounds = array<i64: 1>, scalar_prefetch = 0 : i64, scratch_operands = 0 : i64, tpu.core_type = #tpu.core_type<tc>, window_params = [{transform_indices = @transform_0, window_bounds = array<i64: 2, 32>}, {transform_indices = @transform_1, window_bounds = array<i64: 16, 32>}, {pipeline_mode = #tpu.pipeline_mode<synchronous>, transform_indices = @transform_2, window_bounds = array<i64: 32, 32>}, {pipeline_mode = #tpu.pipeline_mode<synchronous>, transform_indices = @transform_3, window_bounds = array<i64: 32, 32>}, {pipeline_mode = #tpu.pipeline_mode<synchronous>, transform_indices = @transform_4, window_bounds = array<i64: 1, 32>}, {pipeline_mode = #tpu.pipeline_mode<synchronous>, transform_indices = @transform_5, window_bounds = array<i64: 1, 32>}, {transform_indices = @transform_6, window_bounds = array<i64: 2, 8>}]} {
    %c0 = arith.constant 0 : index
    %c0_0 = arith.constant 0 : index
    %0 = vector.load %arg1[%c0, %c0_0] : memref<2x32xf32, #tpu.memory_space<vmem>>, vector<2x32xf32>
    %c0_1 = arith.constant 0 : index
    %c0_2 = arith.constant 0 : index
    %1 = vector.load %arg3[%c0_1, %c0_2] : memref<32x32xf32, #tpu.memory_space<vmem>>, vector<32x32xf32>
    %cst = arith.constant dense<0.000000e+00> : vector<2x32xf32>
    %2 = tpu.matmul %0, %1, %cst {dimension_numbers = #tpu.dot_dimension_numbers<[1], [0], [0], [1], [0, 0, 1, 1], [], []>} : vector<2x32xf32>, vector<32x32xf32>, vector<2x32xf32> -> vector<2x32xf32>
    %c0_3 = arith.constant 0 : index
    %c0_4 = arith.constant 0 : index
    %3 = vector.load %arg5[%c0_3, %c0_4] : memref<1x32xf32, #tpu.memory_space<vmem>>, vector<1x32xf32>
    %4 = vector.broadcast %3 : vector<1x32xf32> to vector<2x32xf32>
    %5 = arith.addf %2, %4 : vector<2x32xf32>
    %c0_5 = arith.constant 0 : index
    %c0_6 = arith.constant 0 : index
    %6 = vector.load %arg2[%c0_5, %c0_6] : memref<16x32xf32, #tpu.memory_space<vmem>>, vector<16x32xf32>
    %c0_7 = arith.constant 0 : index
    %c0_8 = arith.constant 0 : index
    %7 = vector.load %arg4[%c0_7, %c0_8] : memref<32x32xf32, #tpu.memory_space<vmem>>, vector<32x32xf32>
    %cst_9 = arith.constant dense<0.000000e+00> : vector<16x32xf32>
    %8 = tpu.matmul %6, %7, %cst_9 {dimension_numbers = #tpu.dot_dimension_numbers<[1], [0], [0], [1], [0, 0, 1, 1], [], []>} : vector<16x32xf32>, vector<32x32xf32>, vector<16x32xf32> -> vector<16x32xf32>
    %9 = vector.shape_cast %8 : vector<16x32xf32> to vector<2x8x32xf32>
    %10 = vector.shape_cast %5 : vector<2x32xf32> to vector<2x1x32xf32>
    %11 = vector.broadcast %10 : vector<2x1x32xf32> to vector<2x8x32xf32>
    %12 = arith.addf %9, %11 : vector<2x8x32xf32>
    %13 = math.tanh %12 : vector<2x8x32xf32>
    %c0_10 = arith.constant 0 : index
    %c0_11 = arith.constant 0 : index
    %14 = vector.load %arg6[%c0_10, %c0_11] : memref<1x32xf32, #tpu.memory_space<vmem>>, vector<1x32xf32>
    %15 = vector.shape_cast %14 : vector<1x32xf32> to vector<1x1x32xf32>
    %16 = vector.broadcast %15 : vector<1x1x32xf32> to vector<2x8x32xf32>
    %17 = arith.mulf %13, %16 : vector<2x8x32xf32>
    %cst_12 = arith.constant dense<0.000000e+00> : vector<2x8xf32>
    %18 = vector.multi_reduction <add>, %17, %cst_12 [2] : vector<2x8x32xf32> to vector<2x8xf32>
    %cst_13 = arith.constant dense<0xFF800000> : vector<2xf32>
    %19 = vector.multi_reduction <maximumf>, %18, %cst_13 [1] : vector<2x8xf32> to vector<2xf32>
    %20 = vector.shape_cast %19 : vector<2xf32> to vector<2x1xf32>
    %21 = vector.broadcast %20 : vector<2x1xf32> to vector<2x8xf32>
    %22 = arith.subf %18, %21 : vector<2x8xf32>
    %23 = math.exp %22 : vector<2x8xf32>
    %cst_14 = arith.constant dense<0.000000e+00> : vector<2xf32>
    %24 = vector.multi_reduction <add>, %23, %cst_14 [1] : vector<2x8xf32> to vector<2xf32>
    %25 = vector.shape_cast %24 : vector<2xf32> to vector<2x1xf32>
    %26 = vector.broadcast %25 : vector<2x1xf32> to vector<2x8xf32>
    %27 = arith.divf %23, %26 : vector<2x8xf32>
    %c0_15 = arith.constant 0 : index
    %c0_16 = arith.constant 0 : index
    %28 = vector.load %arg7[%c0_15, %c0_16] : memref<2x8xf32, #tpu.memory_space<vmem>>, vector<2x8xf32>
    tpu.vector_store %arg7[%c0_15, %c0_16], %27 {strides = array<i32>} : memref<2x8xf32, #tpu.memory_space<vmem>>, vector<2x8xf32>,
    return
  }
  func.func @transform_0(%arg0: i32) -> (i32, i32) {
    %c0_i32 = arith.constant 0 : i32
    %c0_i32_0 = arith.constant 0 : i32
    return %arg0, %c0_i32 : i32, i32
  }
  func.func @transform_1(%arg0: i32) -> (i32, i32) {
    %c0_i32 = arith.constant 0 : i32
    %c0_i32_0 = arith.constant 0 : i32
    return %arg0, %c0_i32 : i32, i32
  }
  func.func @transform_2(%arg0: i32) -> (i32, i32) {
    %c0_i32 = arith.constant 0 : i32
    %c0_i32_0 = arith.constant 0 : i32
    %c0_i32_1 = arith.constant 0 : i32
    return %c0_i32, %c0_i32_0 : i32, i32
  }
  func.func @transform_3(%arg0: i32) -> (i32, i32) {
    %c0_i32 = arith.constant 0 : i32
    %c0_i32_0 = arith.constant 0 : i32
    %c0_i32_1 = arith.constant 0 : i32
    return %c0_i32, %c0_i32_0 : i32, i32
  }
  func.func @transform_4(%arg0: i32) -> (i32, i32) {
    %c0_i32 = arith.constant 0 : i32
    %c0_i32_0 = arith.constant 0 : i32
    %c0_i32_1 = arith.constant 0 : i32
    return %c0_i32, %c0_i32_0 : i32, i32
  }
  func.func @transform_5(%arg0: i32) -> (i32, i32) {
    %c0_i32 = arith.constant 0 : i32
    %c0_i32_0 = arith.constant 0 : i32
    %c0_i32_1 = arith.constant 0 : i32
    return %c0_i32, %c0_i32_0 : i32, i32
  }
  func.func @transform_6(%arg0: i32) -> (i32, i32) {
    %c0_i32 = arith.constant 0 : i32
    %c0_i32_0 = arith.constant 0 : i32
    return %arg0, %c0_i32 : i32, i32
  }
}

</mosaic_0001>

<llo_original>
// kernel: tpu_custom_call.1
$region0: #{tpu_custom_call.1}
  #allocation0 [shape = 'u32[]', space=smem, size = 0x4, offset = 0x4, fixed_abs, tag = 'smem constant byte address 0x4 - core index']
  #allocation1 [shape = 'u32[144,128]{1,0:T(1,128)}', space=vmem, size = 0x12000, scoped, tag = 'internal scratch']
  %s0 = inlined_call_operand.hbm [shape: f32[2,32], index: 0, kind: input, shape index: {}]
  %s1 = inlined_call_operand.hbm [shape: f32[16,32], index: 1, kind: input, shape index: {}]
  %s2 = inlined_call_operand.hbm [shape: f32[32,32], index: 2, kind: input, shape index: {}]
  %s3 = inlined_call_operand.hbm [shape: f32[32,32], index: 3, kind: input, shape index: {}]
  %s4 = inlined_call_operand.vmem [shape: f32[1,32], index: 4, kind: input, shape index: {}]
  %s5 = inlined_call_operand.vmem [shape: f32[1,32], index: 5, kind: input, shape index: {}]
  %s6 = inlined_call_operand.hbm [shape: f32[2,8], index: 6, kind: output, shape index: {}]
  %s7 = sld [smem:[#allocation0]]
  $region50: #{tpu_custom_call.1} parent=0
    _
  %s9 = ssub.s32 1, %s7
  %s10 = scalar_select 0, %s9, %s7
  $region1: #{tpu_custom_call.1} parent=0
    #allocation2 [shape = 'u8[1024]{0}', space=vmem, size = 0x400, scoped, tag = 'input window, operand 0, single buffered']
    #allocation3 [shape = 's32[1]{0}', space=sflag, size = 0x4, scoped, tag = 'scoped memory for tpu_custom_call.1']
    #allocation4 [shape = 's32[1]{0}', space=sflag, size = 0x4, scoped, tag = 'scoped memory for tpu_custom_call.1']
    #allocation5 [shape = 'u8[8192]{0}', space=vmem, size = 0x2000, scoped, tag = 'input window, operand 1, single buffered']
    #allocation6 [shape = 's32[1]{0}', space=sflag, size = 0x4, scoped, tag = 'scoped memory for tpu_custom_call.1']
    #allocation7 [shape = 'u8[16384]{0}', space=vmem, size = 0x4000, scoped, tag = 'input window, operand 2, single buffered']
    #allocation8 [shape = 'u8[16384]{0}', space=vmem, size = 0x4000, scoped, tag = 'input window, operand 3, single buffered']
    #allocation9 [shape = 's32[1]{0}', space=sflag, size = 0x4, scoped, tag = 'scoped memory for tpu_custom_call.1']
    #allocation10 [shape = 'u8[1024]{0}', space=vmem, size = 0x400, scoped, tag = 'output window, operand 0, single buffered']
    %11 = vsyncpa [#allocation3], 0
    %12 = vsyncpa [#allocation6], 0
    %13 = vsyncpa [#allocation9], 0
    %14 = vsyncpa [#allocation4], 0
    // Predicated region
    $region2: #{tpu_custom_call.1} parent=1 // pred_check
      _
    $region3: #{tpu_custom_call.1} parent=1 // pred_check_branch
      %16 = sbr.rel (0) target = $region5
    $region4: #{tpu_custom_call.1} parent=1 // pred_region
      %s18 = ssub.s32 32, 32
      %19 = vsyncadd [#allocation3], %s18
      %s21 = sshll.u32 [#allocation2], 4
      %s22 = int_to_ptr.vmem [resolvable:$true] %s21
      %24 = dma.hbm_to_vmem [thread:$0]  %s0, 32, %s22, [#allocation3]
    $region5: #{tpu_custom_call.1} parent=1 // pred_fallthru
      _
    // Predicated region
    $region6: #{tpu_custom_call.1} parent=1 // pred_check
      _
    $region7: #{tpu_custom_call.1} parent=1 // pred_check_branch
      %26 = sbr.rel (0) target = $region9
    $region8: #{tpu_custom_call.1} parent=1 // pred_region
      %s28 = ssub.s32 256, 256
      %29 = vsyncadd [#allocation6], %s28
      %s30 = sshll.u32 [#allocation5], 4
      %s31 = int_to_ptr.vmem [resolvable:$true] %s30
      %36 = dma.hbm_to_vmem [thread:$0]  %s1, 256, %s31, [#allocation6], 128, 128, 8
    $region9: #{tpu_custom_call.1} parent=1 // pred_fallthru
      _
    // Predicated region
    $region10: #{tpu_custom_call.1} parent=1 // pred_check
      _
    $region11: #{tpu_custom_call.1} parent=1 // pred_check_branch
      %38 = sbr.rel (0) target = $region13
    $region12: #{tpu_custom_call.1} parent=1 // pred_region
      %s40 = ssub.s32 512, 512
      %41 = vsyncadd [#allocation6], %s40
      %s42 = sshll.u32 [#allocation7], 4
      %s43 = int_to_ptr.vmem [resolvable:$true] %s42
      %48 = dma.hbm_to_vmem [thread:$0]  %s2, 512, %s43, [#allocation6], 128, 128, 8
    $region13: #{tpu_custom_call.1} parent=1 // pred_fallthru
      _
    // Predicated region
    $region14: #{tpu_custom_call.1} parent=1 // pred_check
      _
    $region15: #{tpu_custom_call.1} parent=1 // pred_check_branch
      %50 = sbr.rel (0) target = $region17
    $region16: #{tpu_custom_call.1} parent=1 // pred_region
      %s52 = ssub.s32 512, 512
      %53 = vsyncadd [#allocation9], %s52
      %s54 = sshll.u32 [#allocation8], 4
      %s55 = int_to_ptr.vmem [resolvable:$true] %s54
      %60 = dma.hbm_to_vmem [thread:$0]  %s3, 512, %s55, [#allocation9], 128, 128, 8
    $region17: #{tpu_custom_call.1} parent=1 // pred_fallthru
      _
    // Predicated region
    $region18: #{tpu_custom_call.1} parent=1 // pred_check
      _
    $region19: #{tpu_custom_call.1} parent=1 // pred_check_branch
      %62 = sbr.rel (0) target = $region21
    $region20: #{tpu_custom_call.1} parent=1 // pred_region
      _
    $region21: #{tpu_custom_call.1} parent=1 // pred_fallthru
      _
    // Predicated region
    $region22: #{tpu_custom_call.1} parent=1 // pred_check
      _
    $region23: #{tpu_custom_call.1} parent=1 // pred_check_branch
      %64 = sbr.rel (0) target = $region25
    $region24: #{tpu_custom_call.1} parent=1 // pred_region
      _
    $region25: #{tpu_custom_call.1} parent=1 // pred_fallthru
      _
    // Predicated region
    $region26: #{tpu_custom_call.1} parent=1 // pred_check
      _
    $region27: #{tpu_custom_call.1} parent=1 // pred_check_branch
      %66 = sbr.rel (0) target = $region29
    $region28: #{tpu_custom_call.1} parent=1 // pred_region
      %67 = dma.done [#allocation3], 32
    $region29: #{tpu_custom_call.1} parent=1 // pred_fallthru
      _
    // Predicated region
    $region30: #{tpu_custom_call.1} parent=1 // pred_check
      _
    $region31: #{tpu_custom_call.1} parent=1 // pred_check_branch
      %69 = sbr.rel (0) target = $region33
    $region32: #{tpu_custom_call.1} parent=1 // pred_region
      %70 = dma.done [#allocation6], 256
    $region33: #{tpu_custom_call.1} parent=1 // pred_fallthru
      _
    // Predicated region
    $region34: #{tpu_custom_call.1} parent=1 // pred_check
      _
    $region35: #{tpu_custom_call.1} parent=1 // pred_check_branch
      %72 = sbr.rel (0) target = $region37
    $region36: #{tpu_custom_call.1} parent=1 // pred_region
      %73 = dma.done [#allocation6], 512
    $region37: #{tpu_custom_call.1} parent=1 // pred_fallthru
      _
    // Predicated region
    $region38: #{tpu_custom_call.1} parent=1 // pred_check
      _
    $region39: #{tpu_custom_call.1} parent=1 // pred_check_branch
      %75 = sbr.rel (0) target = $region41
    $region40: #{tpu_custom_call.1} parent=1 // pred_region
      %76 = dma.done [#allocation9], 512
    $region41: #{tpu_custom_call.1} parent=1 // pred_fallthru
      _
    %v77 = vld [vmem:[#allocation2] sm:$0x3]
    %v78 = vld [vmem:[#allocation7] sm:$0xff]
    %v79 = vld [vmem:[#allocation7 + $0x8] sm:$0xff]
    %v80 = vld [vmem:[#allocation7 + $0x10] sm:$0xff]
    %v81 = vld [vmem:[#allocation7 + $0x18] sm:$0xff]
    %v82 = vld [vmem:[%s4] sm:$0x1]
    %v84 = vlaneseq
    %v85 = vshrl.u32 %v84, 7
    %v86 = vsub.s32 0, %v85
    %v87 = vrot.slane %v82, %v86
    %vm89 = vcmask 261120
    %v91 = vsel %vm89, %v77, 0
    %93 = vmatprep.subr.mxu0 0.0
    %94 = vmatpush1.msra.mxu0 %v78
    %95 = vmatprep.subr.mxu0 0.0
    %96 = vmatpush1.msra.mxu0 %v79
    %97 = vmatprep.subr.mxu0 0.0
    %98 = vmatpush1.msra.mxu0 %v80
    %99 = vmatprep.subr.mxu0 0.0
    %100 = vmatpush1.msra.mxu0 %v81
    %101 = vmatprep.subr.mxu0 0.0
    %102 = vmatpush1.msra.mxu0 0.0
    %103 = vmatprep.subr.mxu0 0.0
    %104 = vmatpush1.msra.mxu0 0.0
    %105 = vmatprep.subr.mxu0 0.0
    %106 = vmatpush1.msra.mxu0 0.0
    %107 = vmatprep.subr.mxu0 0.0
    %108 = vmatpush1.msra.mxu0 0.0
    %109 = vmatprep.subr.mxu0 0.0
    %110 = vmatpush1.msra.mxu0 0.0
    %111 = vmatprep.subr.mxu0 0.0
    %112 = vmatpush1.msra.mxu0 0.0
    %113 = vmatprep.subr.mxu0 0.0
    %114 = vmatpush1.msra.mxu0 0.0
    %115 = vmatprep.subr.mxu0 0.0
    %116 = vmatpush1.msra.mxu0 0.0
    %117 = vmatprep.subr.mxu0 0.0
    %118 = vmatpush1.msra.mxu0 0.0
    %119 = vmatprep.subr.mxu0 0.0
    %120 = vmatpush1.msra.mxu0 0.0
    %121 = vmatprep.subr.mxu0 0.0
    %122 = vmatpush1.msra.mxu0 0.0
    %123 = vmatprep.subr.mxu0 0.0
    %124 = vmatpush1.msra.mxu0 0.0
    %125 = vmatprep.subr.mxu0 0.0
    %126 = vmatpush1.msra.mxu0 0.0
    %127 = vmatprep.subr.mxu0 0.0
    %128 = vmatpush1.msra.mxu0 0.0
    %129 = vmatprep.subr.mxu0 0.0
    %130 = vmatpush1.msra.mxu0 0.0
    %131 = vmatprep.subr.mxu0 0.0
    %132 = vmatpush1.msra.mxu0 0.0
    %133 = vmatprep.subr.mxu0 0.0
    %134 = vmatpush1.msra.mxu0 0.0
    %135 = vmatprep.subr.mxu0 0.0
    %136 = vmatpush1.msra.mxu0 0.0
    %137 = vmatprep.subr.mxu0 0.0
    %138 = vmatpush1.msra.mxu0 0.0
    %139 = vmatprep.subr.mxu0 0.0
    %140 = vmatpush1.msra.mxu0 0.0
    %141 = vmatprep.subr.mxu0 0.0
    %142 = vmatpush1.msra.mxu0 0.0
    %143 = vmatprep.subr.mxu0 0.0
    %144 = vmatpush1.msra.mxu0 0.0
    %145 = vmatprep.subr.mxu0 0.0
    %146 = vmatpush1.msra.mxu0 0.0
    %147 = vmatprep.subr.mxu0 0.0
    %148 = vmatpush1.msra.mxu0 0.0
    %149 = vmatprep.subr.mxu0 0.0
    %150 = vmatpush1.msra.mxu0 0.0
    %151 = vmatprep.subr.mxu0 0.0
    %152 = vmatpush1.msra.mxu0 0.0
    %153 = vmatprep.subr.mxu0 0.0
    %154 = vmatpush1.msra.mxu0 0.0
    %155 = vmatprep.subr.mxu0 0.0
    %156 = vmatpush1.msra.mxu0 0.0
    %157 = vmatprep.mubr.f32.mxu0 0.0
    %158 = vmatmul.mubr.f32.gmra.mrb[0].mxu0 %v91
    %v159 = vpop.f32.mrb[0].mxu0
    %v160 = vadd.f32 %v87, %v159
    %v161 = vpop.f32.mrb[0].mxu0
    %162 = vdwg.mxu0
    %v163 = vld [vmem:[#allocation5] sm:$0xff]
    %v164 = vld [vmem:[#allocation5 + $0x8] sm:$0xff]
    %v165 = vld [vmem:[#allocation8] sm:$0xff]
    %v166 = vld [vmem:[#allocation8 + $0x8] sm:$0xff]
    %v167 = vld [vmem:[#allocation8 + $0x10] sm:$0xff]
    %v168 = vld [vmem:[#allocation8 + $0x18] sm:$0xff]
    %v170 = vsel %vm89, %v163, 0
    %v173 = vsel %vm89, %v164, 0
    %175 = vmatprep.subr.mxu0 0.0
    %176 = vmatpush1.msra.mxu0 %v165
    %177 = vmatprep.subr.mxu0 0.0
    %178 = vmatpush1.msra.mxu0 %v166
    %179 = vmatprep.subr.mxu0 0.0
    %180 = vmatpush1.msra.mxu0 %v167
    %181 = vmatprep.subr.mxu0 0.0
    %182 = vmatpush1.msra.mxu0 %v168
    %183 = vmatprep.subr.mxu0 0.0
    %184 = vmatpush1.msra.mxu0 0.0
    %185 = vmatprep.subr.mxu0 0.0
    %186 = vmatpush1.msra.mxu0 0.0
    %187 = vmatprep.subr.mxu0 0.0
    %188 = vmatpush1.msra.mxu0 0.0
    %189 = vmatprep.subr.mxu0 0.0
    %190 = vmatpush1.msra.mxu0 0.0
    %191 = vmatprep.subr.mxu0 0.0
    %192 = vmatpush1.msra.mxu0 0.0
    %193 = vmatprep.subr.mxu0 0.0
    %194 = vmatpush1.msra.mxu0 0.0
    %195 = vmatprep.subr.mxu0 0.0
    %196 = vmatpush1.msra.mxu0 0.0
    %197 = vmatprep.subr.mxu0 0.0
    %198 = vmatpush1.msra.mxu0 0.0
    %199 = vmatprep.subr.mxu0 0.0
    %200 = vmatpush1.msra.mxu0 0.0
    %201 = vmatprep.subr.mxu0 0.0
    %202 = vmatpush1.msra.mxu0 0.0
    %203 = vmatprep.subr.mxu0 0.0
    %204 = vmatpush1.msra.mxu0 0.0
    %205 = vmatprep.subr.mxu0 0.0
    %206 = vmatpush1.msra.mxu0 0.0
    %207 = vmatprep.subr.mxu0 0.0
    %208 = vmatpush1.msra.mxu0 0.0
    %209 = vmatprep.subr.mxu0 0.0
    %210 = vmatpush1.msra.mxu0 0.0
    %211 = vmatprep.subr.mxu0 0.0
    %212 = vmatpush1.msra.mxu0 0.0
    %213 = vmatprep.subr.mxu0 0.0
    %214 = vmatpush1.msra.mxu0 0.0
    %215 = vmatprep.subr.mxu0 0.0
    %216 = vmatpush1.msra.mxu0 0.0
    %217 = vmatprep.subr.mxu0 0.0
    %218 = vmatpush1.msra.mxu0 0.0
    %219 = vmatprep.subr.mxu0 0.0
    %220 = vmatpush1.msra.mxu0 0.0
    %221 = vmatprep.subr.mxu0 0.0
    %222 = vmatpush1.msra.mxu0 0.0
    %223 = vmatprep.subr.mxu0 0.0
    %224 = vmatpush1.msra.mxu0 0.0
    %225 = vmatprep.subr.mxu0 0.0
    %226 = vmatpush1.msra.mxu0 0.0
    %227 = vmatprep.subr.mxu0 0.0
    %228 = vmatpush1.msra.mxu0 0.0
    %229 = vmatprep.subr.mxu0 0.0
    %230 = vmatpush1.msra.mxu0 0.0
    %231 = vmatprep.subr.mxu0 0.0
    %232 = vmatpush1.msra.mxu0 0.0
    %233 = vmatprep.subr.mxu0 0.0
    %234 = vmatpush1.msra.mxu0 0.0
    %235 = vmatprep.subr.mxu0 0.0
    %236 = vmatpush1.msra.mxu0 0.0
    %237 = vmatprep.subr.mxu0 0.0
    %238 = vmatpush1.msra.mxu0 0.0
    %239 = vmatprep.mubr.f32.mxu0 0.0
    %240 = vmatmul.mubr.f32.gmra.mrb[0].mxu0 %v170
    %v241 = vpop.f32.mrb[0].mxu0
    %v242 = vadd.f32 0.0, %v241
    %v243 = vpop.f32.mrb[0].mxu0
    %244 = vmatprep.mubr.f32.mxu0 0.0
    %245 = vmatmul.mubr.f32.gmra.mrb[0].mxu0 %v173
    %v246 = vpop.f32.mrb[0].mxu0
    %v247 = vadd.f32 0.0, %v246
    %v248 = vpop.f32.mrb[0].mxu0
    %249 = vdwg.mxu0
    %v252 = vunpack.c.l.s4 1966171168
    %v253 = vunpack.c.0.s8 %v252
    %v254 = vlaneseq
    %v255 = vshrl.u32 %v254, 7
    %v256 = vsub.s32 %v253, %v255
    %v257 = vrot.slane %v160, %v256
    %v258 = vcombine.high %v257, %v257
    %v260 = vunpack.c.l.s4 1966171168
    %v261 = vunpack.c.0.s8 %v260
    %v262 = vlaneseq
    %v263 = vshrl.u32 %v262, 7
    %v264 = vsub.s32 %v261, %v263
    %v265 = vrot.slane %v257, %v264
    %v267 = vunpack.c.l.s4 1966171168
    %v268 = vunpack.c.0.s8 %v267
    %v269 = vlaneseq
    %v270 = vshrl.u32 %v269, 7
    %v271 = vsub.s32 %v268, %v270
    %v272 = vrot.slane %v258, %v271
    %v273 = vlaneseq
    %v274 = vshrl.u32 %v273, 7
    %v275 = vsub.s32 0, %v274
    %v276 = vrot.slane %v265, %v275
    %v277 = vlaneseq
    %v278 = vshrl.u32 %v277, 7
    %v279 = vsub.s32 0, %v278
    %v280 = vrot.slane %v272, %v279
    %v283 = vadd.f32 %v242, %v276
    %v284 = vadd.f32 %v247, %v280
    %v285 = vtanh.pop %v283
    %v286 = vtanh.pop %v284
    %v287 = vld [vmem:[%s5] sm:$0x1]
    %v289 = vlaneseq
    %v290 = vshrl.u32 %v289, 7
    %v291 = vsub.s32 0, %v290
    %v292 = vrot.slane %v287, %v291
    %v294 = vmul.f32 %v285, %v292
    %v295 = vmul.f32 %v286, %v292
    %v296 = vsel %vm89, %v294, 0.0
    %297 = vadd.xlane.f32.xlu0 %v296
    %v298 = vpop.xlane.xlu0 %297
    %v299 = vsel %vm89, %v295, 0.0
    %300 = vadd.xlane.f32.xlu0 %v299
    %v301 = vpop.xlane.xlu0 %300
    %v304 = vlaneseq
    %v305 = vand.u32 %v304, 127
    %v306 = vlaneseq
    %v307 = vshrl.u32 %v306, 7
    %v308 = vsub.s32 %v305, %v307
    %v309 = vrot.slane %v298, %v308
    %v310 = vlaneseq
    %v311 = vshrl.u32 %v310, 7
    %v312 = vsub.s32 %v305, %v311
    %v313 = vrot.slane %v301, %v312
    %vm314 = vcmask 1041409
    %v315 = vsel %vm314, %v313, %v309
    %vm317 = vcmask 58368
    %v318 = vsel %vm317, %v315, -inf
    %319 = vmax.xlane.f32.xlu0 %v318
    %v320 = vpop.xlane.xlu0 %319
    %v322 = vlaneseq
    %v323 = vshrl.u32 %v322, 7
    %v324 = vsub.s32 0, %v323
    %v325 = vrot.slane %v320, %v324
    %v326 = vlaneseq
    %v327 = vshrl.u32 %v326, 7
    %v328 = vsub.s32 1, %v327
    %v329 = vrot.slane %v320, %v328
    %v332 = vsub.f32 %v298, %v325
    %v333 = vsub.f32 %v301, %v329
    %v334 = vmul.f32 %v332, 1.442695
    %v335 = vpow.pop %v334
    %v336 = vmul.f32 %v333, 1.442695
    %v337 = vpow.pop %v336
    %340 = vset.pattern.permute.xlu0 0
    %341 = vperm.xlu0 %340, %v335
    %v342 = vpop.permute.xlu0 %341
    %343 = vset.pattern.permute.xlu0 0
    %344 = vperm.xlu0 %343, %v337
    %v345 = vpop.permute.xlu0 %344
    %v346 = vlaneseq
    %v347 = vshrl.u32 %v346, 7
    %v348 = vsub.s32 %v305, %v347
    %v349 = vrot.slane %v342, %v348
    %v350 = vlaneseq
    %v351 = vshrl.u32 %v350, 7
    %v352 = vsub.s32 %v305, %v351
    %v353 = vrot.slane %v345, %v352
    %v354 = vsel %vm314, %v353, %v349
    %v356 = vsel %vm317, %v354, 0.0
    %357 = vadd.xlane.f32.xlu0 %v356
    %v358 = vpop.xlane.xlu0 %357
    %v360 = vlaneseq
    %v361 = vshrl.u32 %v360, 7
    %v362 = vsub.s32 0, %v361
    %v363 = vrot.slane %v358, %v362
    %v364 = vlaneseq
    %v365 = vshrl.u32 %v364, 7
    %v366 = vsub.s32 1, %v365
    %v367 = vrot.slane %v358, %v366
    %v370 = vrcp.pop %v363
    %v371 = vmul.f32 %v335, %v370
    %v372 = vrcp.pop %v367
    %v373 = vmul.f32 %v337, %v372
    %376 = vset.pattern.permute.xlu0 0
    %377 = vperm.xlu0 %376, %v371
    %v378 = vpop.permute.xlu0 %377
    %379 = vset.pattern.permute.xlu0 0
    %380 = vperm.xlu0 %379, %v373
    %v381 = vpop.permute.xlu0 %380
    %v382 = vlaneseq
    %v383 = vshrl.u32 %v382, 7
    %v384 = vsub.s32 %v305, %v383
    %v385 = vrot.slane %v378, %v384
    %v386 = vlaneseq
    %v387 = vshrl.u32 %v386, 7
    %v388 = vsub.s32 %v305, %v387
    %v389 = vrot.slane %v381, %v388
    %v390 = vsel %vm314, %v389, %v385
    %392 = vst.msk [vmem:[#allocation10] sm:$0x3] %vm317, %v390
    // Predicated region
    $region42: #{tpu_custom_call.1} parent=1 // pred_check
      _
    $region43: #{tpu_custom_call.1} parent=1 // pred_check_branch
      %394 = sbr.rel (0) target = $region45
    $region44: #{tpu_custom_call.1} parent=1 // pred_region
      %s396 = ssub.s32 32, 32
      %397 = vsyncadd [#allocation4], %s396
      %s399 = sshll.u32 [#allocation10], 4
      %s400 = int_to_ptr.vmem [resolvable:$true] %s399
      %402 = dma.vmem_to_hbm [thread:$0]  %s400, 32, %s6, [#allocation4]
    $region45: #{tpu_custom_call.1} parent=1 // pred_fallthru
      _
    // Predicated region
    $region46: #{tpu_custom_call.1} parent=1 // pred_check
      _
    $region47: #{tpu_custom_call.1} parent=1 // pred_check_branch
      %404 = sbr.rel (0) target = $region49
    $region48: #{tpu_custom_call.1} parent=1 // pred_region
      %405 = dma.done [#allocation4], 32
    $region49: #{tpu_custom_call.1} parent=1 // pred_fallthru
      _
    %406 = vsyncpa [#allocation3], 1
    %407 = vsyncpa [#allocation6], 1
    %408 = vsyncpa [#allocation9], 1
    %409 = vsyncpa [#allocation4], 1

</llo_original>
